<compile_context>
chip_gen: v7x
topology: tpu7x:2x2x1
jax: 0.10.0
libtpu: 0.0.40
codegen_flags: <defaults>
</compile_context>

<pallas_src>
import functools

import jax
import jax.numpy as jnp
from jax.experimental import pallas as pl
from jax.experimental.pallas import tpu as pltpu

_LANE = 128          # vreg lane width; last block dim maps here (unmasked vst)
_SUBLANE_PACK = 32   # row-block multiple: covers f32(8)/bf16(16)/int8(32) packing


def _add_kernel(a_ref, b_ref, o_ref):
    # Cast in-kernel so mixed-dtype inputs are read at their original width;
    # the cast rides in otherwise-idle VPU slots of this mem-bound kernel.
    o_ref[...] = a_ref[...].astype(o_ref.dtype) + b_ref[...].astype(o_ref.dtype)


@functools.lru_cache(maxsize=None)
def _vmem_budget():
    """(per-buffer byte budget, vmem_limit_bytes), generation aware.

    v7x: 64 MiB physical VMEM per TC -> 4 MiB/buffer (~24 MiB resident for 6
    double-buffered buffers), scoped limit 32 MiB.
    v5e/v6e: 128 MiB physical VMEM -> 8 MiB/buffer (~48 MiB resident), scoped
    limit 64 MiB (v5e's default scoped limit is only 16 MiB, so the explicit
    limit is mandatory there).
    """
    try:
        vmem_cap = getattr(pltpu.get_tpu_info(), "vmem_capacity_bytes", 64 << 20)
    except Exception:
        vmem_cap = 64 << 20                      # conservative (v7x-sized)
    if vmem_cap <= (64 << 20):
        return 4 << 20, 32 << 20                 # v7x
    return 8 << 20, 64 << 20                     # v5e / v6e


def _compiler_params(vmem_limit):
    return pltpu.CompilerParams(
        dimension_semantics=("parallel",),
        vmem_limit_bytes=vmem_limit,
    )


def _add_2d(a2, b2, out_dtype, rows, cols, max_item, budget, vmem_limit, cost):
    """Lane-dense (rows, cols) tiled add; cols is a multiple of 128."""
    # Dtype-aware block: fill the per-buffer byte budget, round to 32 rows.
    block_rows = (budget // (cols * max_item)) // _SUBLANE_PACK * _SUBLANE_PACK
    block_rows = max(block_rows, _SUBLANE_PACK)
    # Guarantee >= 2 grid steps for >~1 MiB tensors so the "parallel" axis can
    # shard across v7x's two TensorCores and DMA pipelines with compute.
    if rows * cols * max_item > (1 << 20):
        half = pl.cdiv(rows, 2)
        half = pl.cdiv(half, _SUBLANE_PACK) * _SUBLANE_PACK
        block_rows = min(block_rows, half)
    if block_rows >= rows:
        block_rows = rows                         # single full-extent block
    grid = (pl.cdiv(rows, block_rows),)           # ragged last block is masked

    return pl.pallas_call(
        _add_kernel,
        out_shape=jax.ShapeDtypeStruct((rows, cols), out_dtype),
        grid=grid,
        in_specs=[
            pl.BlockSpec((block_rows, cols), lambda i: (i, 0)),
            pl.BlockSpec((block_rows, cols), lambda i: (i, 0)),
        ],
        out_specs=pl.BlockSpec((block_rows, cols), lambda i: (i, 0)),
        compiler_params=_compiler_params(vmem_limit),
        cost_estimate=cost,
    )(a2, b2)


def _add_1d(a1, b1, out_dtype, n, max_item, budget, vmem_limit, cost):
    """Ragged (n % 128 != 0) path: flat 1-D tiling, no pad, masked last block."""
    block = (budget // max_item) // (_LANE * 8) * (_LANE * 8)
    block = max(block, _LANE * 8)
    if block >= n:
        block = n                                 # full-extent block
    grid = (pl.cdiv(n, block),)

    return pl.pallas_call(
        _add_kernel,
        out_shape=jax.ShapeDtypeStruct((n,), out_dtype),
        grid=grid,
        in_specs=[
            pl.BlockSpec((block,), lambda i: (i,)),
            pl.BlockSpec((block,), lambda i: (i,)),
        ],
        out_specs=pl.BlockSpec((block,), lambda i: (i,)),
        compiler_params=_compiler_params(vmem_limit),
        cost_estimate=cost,
    )(a1, b1)


def pallas_add(a: jax.Array, b: jax.Array) -> jax.Array:
    """Elementwise add (torch.add(a, b)) via a Pallas TPU kernel."""
    if a.shape != b.shape:
        # torch.add broadcasts; _AddOp is only used for same-shaped residual
        # adds, so use the fused XLA add here instead of materializing a
        # broadcasted operand in HBM just to feed the kernel.
        return jnp.add(a, b)

    # TODO(synk): jnp.result_type may differ from torch's promotion table for
    # exotic mixed-dtype pairs; identical-dtype inputs (the real use) are exact.
    out_dtype = jnp.result_type(a.dtype, b.dtype)
    orig_shape = a.shape
    n = int(a.size)
    if n == 0:
        return jnp.zeros(orig_shape, out_dtype)

    budget, vmem_limit = _vmem_budget()
    a_item = jnp.dtype(a.dtype).itemsize
    b_item = jnp.dtype(b.dtype).itemsize
    o_item = jnp.dtype(out_dtype).itemsize
    max_item = max(a_item, b_item, o_item)
    cost = pl.CostEstimate(
        flops=n,
        transcendentals=0,
        bytes_accessed=n * (a_item + b_item + o_item),
    )

    last = orig_shape[-1] if len(orig_shape) else 1

    if last % _LANE == 0 and last * max_item * _SUBLANE_PACK <= budget:
        # Native trailing dim is already lane-aligned: collapse only leading
        # dims (free bitcast for contiguous row-major inputs; avoids a hidden
        # relayout copy that a full ravel-to-128 could trigger).
        cols = last
        rows = n // cols
        out2 = _add_2d(a.reshape(rows, cols), b.reshape(rows, cols),
                       out_dtype, rows, cols, max_item, budget, vmem_limit, cost)
        return out2.reshape(orig_shape)

    if n % _LANE == 0:
        # Total size lane-aligned: view as (rows, 128) slab (free bitcast for
        # contiguous default-layout inputs).
        cols = _LANE
        rows = n // _LANE
        out2 = _add_2d(a.reshape(rows, cols), b.reshape(rows, cols),
                       out_dtype, rows, cols, max_item, budget, vmem_limit, cost)
        return out2.reshape(orig_shape)

    # Ragged total size: flat 1-D tiling, Pallas masks the ragged last block —
    # no wrapper-side pad or output slice, HBM traffic stays at 3 passes.
    out1 = _add_1d(a.reshape(n), b.reshape(n),
                   out_dtype, n, max_item, budget, vmem_limit, cost)
    return out1.reshape(orig_shape)


class AddOp:
    """JAX mirror of _AddOp: forward takes a list of tensors and adds them."""

    def __init__(self, id):
        self.id = id

    def __repr__(self):
        return "_Add_{}()".format(self.id)

    def __call__(self, inputs):
        return pallas_add(*inputs)


if __name__ == "__main__":
    key = jax.random.PRNGKey(0)
    k0, k1 = jax.random.split(key)
    # Small NCHW inputs consistent with a conv-net elementwise (residual) add.
    x = jax.random.normal(k0, (2, 4, 16, 16), dtype=jnp.float32)
    y = jax.random.normal(k1, (2, 4, 16, 16), dtype=jnp.float32)

    op = AddOp(id=0)
    out = op([x, y])
    out = jax.block_until_ready(out)

    ref = x + y
    assert out.shape == ref.shape and out.dtype == ref.dtype
    assert jnp.allclose(out, ref, atol=1e-6, rtol=1e-6)
    print("KERNEL_OK")
</pallas_src>

<mosaic_0001>
module attributes {stable_mosaic.version = 11 : i64} {
  func.func @_add_kernel(%arg0: i32, %arg1: memref<16x128xf32, #tpu.memory_space<vmem>>, %arg2: memref<16x128xf32, #tpu.memory_space<vmem>>, %arg3: memref<16x128xf32, #tpu.memory_space<vmem>>) attributes {dimension_semantics = [#tpu.dimension_semantics<parallel>], iteration_bounds = array<i64: 1>, scalar_prefetch = 0 : i64, scratch_operands = 0 : i64, tpu.core_type = #tpu.core_type<tc>, window_params = [{transform_indices = @transform_0, window_bounds = array<i64: 16, 128>}, {transform_indices = @transform_1, window_bounds = array<i64: 16, 128>}, {transform_indices = @transform_2, window_bounds = array<i64: 16, 128>}]} {
    %c0 = arith.constant 0 : index
    %c0_0 = arith.constant 0 : index
    %0 = vector.load %arg1[%c0, %c0_0] : memref<16x128xf32, #tpu.memory_space<vmem>>, vector<16x128xf32>
    %c0_1 = arith.constant 0 : index
    %c0_2 = arith.constant 0 : index
    %1 = vector.load %arg2[%c0_1, %c0_2] : memref<16x128xf32, #tpu.memory_space<vmem>>, vector<16x128xf32>
    %2 = arith.addf %0, %1 : vector<16x128xf32>
    %c0_3 = arith.constant 0 : index
    %c0_4 = arith.constant 0 : index
    %3 = vector.load %arg3[%c0_3, %c0_4] : memref<16x128xf32, #tpu.memory_space<vmem>>, vector<16x128xf32>
    tpu.vector_store %arg3[%c0_3, %c0_4], %2 {strides = array<i32>} : memref<16x128xf32, #tpu.memory_space<vmem>>, vector<16x128xf32>,
    return
  }
  func.func @transform_0(%arg0: i32) -> (i32, i32) {
    %c0_i32 = arith.constant 0 : i32
    %c0_i32_0 = arith.constant 0 : i32
    return %arg0, %c0_i32 : i32, i32
  }
  func.func @transform_1(%arg0: i32) -> (i32, i32) {
    %c0_i32 = arith.constant 0 : i32
    %c0_i32_0 = arith.constant 0 : i32
    return %arg0, %c0_i32 : i32, i32
  }
  func.func @transform_2(%arg0: i32) -> (i32, i32) {
    %c0_i32 = arith.constant 0 : i32
    %c0_i32_0 = arith.constant 0 : i32
    return %arg0, %c0_i32 : i32, i32
  }
}

</mosaic_0001>

<llo_original>
// kernel: tpu_custom_call.1
$region0: #{tpu_custom_call.1}
  #allocation0 [shape = 'u32[]', space=smem, size = 0x4, offset = 0x4, fixed_abs, tag = 'smem constant byte address 0x4 - core index']
  #allocation1 [shape = 'u32[144,128]{1,0:T(1,128)}', space=vmem, size = 0x12000, scoped, tag = 'internal scratch']
  %s0 = inlined_call_operand.hbm [shape: f32[16,128], index: 0, kind: input, shape index: {}]
  %s1 = inlined_call_operand.hbm [shape: f32[16,128], index: 1, kind: input, shape index: {}]
  %s2 = inlined_call_operand.hbm [shape: f32[16,128], index: 2, kind: output, shape index: {}]
  %s3 = sld [smem:[#allocation0]]
  $region26: #{tpu_custom_call.1} parent=0
    _
  %s5 = ssub.s32 1, %s3
  %s6 = scalar_select 0, %s5, %s3
  $region1: #{tpu_custom_call.1} parent=0
    #allocation2 [shape = 'u8[8192]{0}', space=vmem, size = 0x2000, scoped, tag = 'input window, operand 0, single buffered']
    #allocation3 [shape = 's32[1]{0}', space=sflag, size = 0x4, scoped, tag = 'scoped memory for tpu_custom_call.1']
    #allocation4 [shape = 's32[1]{0}', space=sflag, size = 0x4, scoped, tag = 'scoped memory for tpu_custom_call.1']
    #allocation5 [shape = 'u8[8192]{0}', space=vmem, size = 0x2000, scoped, tag = 'input window, operand 1, single buffered']
    #allocation6 [shape = 's32[1]{0}', space=sflag, size = 0x4, scoped, tag = 'scoped memory for tpu_custom_call.1']
    #allocation7 [shape = 'u8[8192]{0}', space=vmem, size = 0x2000, scoped, tag = 'output window, operand 0, single buffered']
    %7 = vsyncpa [#allocation3], 0
    %8 = vsyncpa [#allocation6], 0
    %9 = vsyncpa [#allocation4], 0
    // Predicated region
    $region2: #{tpu_custom_call.1} parent=1 // pred_check
      _
    $region3: #{tpu_custom_call.1} parent=1 // pred_check_branch
      %11 = sbr.rel (0) target = $region5
    $region4: #{tpu_custom_call.1} parent=1 // pred_region
      %s13 = ssub.s32 256, 256
      %14 = vsyncadd [#allocation3], %s13
      %s15 = sshll.u32 [#allocation2], 4
      %s16 = int_to_ptr.vmem [resolvable:$true] %s15
      %21 = dma.hbm_to_vmem [thread:$0]  %s0, 256, %s16, [#allocation3], 128, 128, 8
    $region5: #{tpu_custom_call.1} parent=1 // pred_fallthru
      _
    // Predicated region
    $region6: #{tpu_custom_call.1} parent=1 // pred_check
      _
    $region7: #{tpu_custom_call.1} parent=1 // pred_check_branch
      %23 = sbr.rel (0) target = $region9
    $region8: #{tpu_custom_call.1} parent=1 // pred_region
      %s25 = ssub.s32 256, 256
      %26 = vsyncadd [#allocation6], %s25
      %s27 = sshll.u32 [#allocation5], 4
      %s28 = int_to_ptr.vmem [resolvable:$true] %s27
      %33 = dma.hbm_to_vmem [thread:$0]  %s1, 256, %s28, [#allocation6], 128, 128, 8
    $region9: #{tpu_custom_call.1} parent=1 // pred_fallthru
      _
    // Predicated region
    $region10: #{tpu_custom_call.1} parent=1 // pred_check
      _
    $region11: #{tpu_custom_call.1} parent=1 // pred_check_branch
      %35 = sbr.rel (0) target = $region13
    $region12: #{tpu_custom_call.1} parent=1 // pred_region
      %36 = dma.done [#allocation3], 256
    $region13: #{tpu_custom_call.1} parent=1 // pred_fallthru
      _
    // Predicated region
    $region14: #{tpu_custom_call.1} parent=1 // pred_check
      _
    $region15: #{tpu_custom_call.1} parent=1 // pred_check_branch
      %38 = sbr.rel (0) target = $region17
    $region16: #{tpu_custom_call.1} parent=1 // pred_region
      %39 = dma.done [#allocation6], 256
    $region17: #{tpu_custom_call.1} parent=1 // pred_fallthru
      _
    %v40 = vld [vmem:[#allocation2] sm:$0xff]
    %v41 = vld [vmem:[#allocation2 + $0x8] sm:$0xff]
    %v42 = vld [vmem:[#allocation5] sm:$0xff]
    %v43 = vld [vmem:[#allocation5 + $0x8] sm:$0xff]
    %v44 = vadd.f32 %v40, %v42
    %v45 = vadd.f32 %v41, %v43
    %46 = vst [vmem:[#allocation7] sm:$0xff] %v44
    %47 = vst [vmem:[#allocation7 + $0x8] sm:$0xff] %v45
    // Predicated region
    $region18: #{tpu_custom_call.1} parent=1 // pred_check
      _
    $region19: #{tpu_custom_call.1} parent=1 // pred_check_branch
      %49 = sbr.rel (0) target = $region21
    $region20: #{tpu_custom_call.1} parent=1 // pred_region
      %s51 = ssub.s32 256, 256
      %52 = vsyncadd [#allocation4], %s51
      %s53 = sshll.u32 [#allocation7], 4
      %s54 = int_to_ptr.vmem [resolvable:$true] %s53
      %59 = dma.vmem_to_hbm [thread:$0]  %s54, 256, %s2, [#allocation4], 128, 128, 8
    $region21: #{tpu_custom_call.1} parent=1 // pred_fallthru
      _
    // Predicated region
    $region22: #{tpu_custom_call.1} parent=1 // pred_check
      _
    $region23: #{tpu_custom_call.1} parent=1 // pred_check_branch
      %61 = sbr.rel (0) target = $region25
    $region24: #{tpu_custom_call.1} parent=1 // pred_region
      %62 = dma.done [#allocation4], 256
    $region25: #{tpu_custom_call.1} parent=1 // pred_fallthru
      _
    %63 = vsyncpa [#allocation3], 1
    %64 = vsyncpa [#allocation6], 1
    %65 = vsyncpa [#allocation4], 1

</llo_original>
